<compile_context>
chip_gen: v5e
topology: v5e:2x2
jax: 0.10.0
libtpu: 0.0.40
codegen_flags: <defaults>
</compile_context>

<pallas_src>
import functools

import numpy as np
import jax
import jax.numpy as jnp
from jax.experimental import pallas as pl
from jax.experimental.pallas import tpu as pltpu


def _round_up(n, m):
    return ((n + m - 1) // m) * m


def _cdiv(a, b):
    return (a + b - 1) // b


def _fftnet_kernel(K, Tp, TT, x0_ref, xh_ref, w1a_ref, w1b_ref, b1_ref,
                   w2_ref, b2_ref, o_ref, wide_ref):
    # x0_ref : (C, TT)      activation window [t*TT, t*TT + TT)
    # xh_ref : (C, Kp)      halo window       [(t+1)*TT, (t+1)*TT + Kp)
    # w1a_ref: (H, C)       [conv1_1 | convc1] weight  (unshifted window)
    # w1b_ref: (H, C)       [conv1_2 | convc2] weight  (K-shifted window)
    # b1_ref : (H, 1)       combined first-layer bias (f32)
    # w2_ref : (Cout, H)    conv2 weight
    # b2_ref : (Cout, 1)    conv2 bias (f32)
    # o_ref  : (Cout, TT)
    # wide_ref: (C, TT+Kp)  VMEM scratch holding the contiguous window so the
    #                       K-shifted slice is one (possibly lane-unaligned) read.
    x0 = x0_ref[...]
    wide_ref[:, :TT] = x0
    wide_ref[:, TT:] = xh_ref[...]
    xk = wide_ref[:, pl.ds(K, TT)]               # window [t*TT+K, t*TT+K+TT)

    z = jnp.dot(w1a_ref[...], x0, preferred_element_type=jnp.float32)
    z = z + jnp.dot(w1b_ref[...], xk, preferred_element_type=jnp.float32)
    h = jnp.maximum(z + b1_ref[...], 0.0)        # relu (f32 epilogue)
    out = jnp.dot(w2_ref[...], h.astype(w2_ref.dtype),
                  preferred_element_type=jnp.float32)
    out = jnp.maximum(out + b2_ref[...], 0.0)

    # Zero the padded tail columns (only the last time tile has any) so the
    # un-trimmed padded output is safe for downstream consumers.
    col = pl.program_id(0) * TT + jax.lax.broadcasted_iota(jnp.int32, out.shape, 1)
    out = jnp.where(col < Tp, out, 0.0)
    o_ref[...] = out.astype(o_ref.dtype)


def fftnet_forward(x, cx, fused_params, layer_id, *, tile_t=2048,
                   trim_output=True, vmem_limit_bytes=None):
    """FFTNet layer forward.

    x : (B, Cin, T) NCW, cx : (B, Ccond, T) NCW (conditioning, required here).
    fused_params: output of fuse_params(); the weight dtype is the compute /
                  activation / output dtype (bf16 by default).
    trim_output : True  -> (B, Cout, T-K), exactly the PyTorch module shape.
                  False -> fast path: (B, Cout, nt*TT) padded output with the
                           tail zeroed in-kernel (skips a full HBM slice pass).
    tile_t / vmem_limit_bytes: per-generation knobs (v5e: keep defaults;
                  v7x: tile_t=4096-8192 and vmem_limit_bytes ~= 45<<20).
    """
    # TODO(synk): cx=None (unconditioned) variant not wired; conditioning path only.
    K = (2 ** layer_id) // 2
    assert K >= 1, "layer_id must be >= 1"
    B, Cin, T = x.shape
    Tp = T - K
    assert Tp >= 1, "time dim must exceed receptive_field / 2"

    w1a, w1b, b1, w2, b2 = fused_params
    H, C = w1a.shape
    Cout = w2.shape[0]
    assert cx is not None and C == Cin + cx.shape[1]
    dt = w1a.dtype

    # Time tiling: TT is a multiple of both 128 and Kp (so the halo block index
    # (t+1)*TT/Kp is exact), capped by tile_t and by the problem size.
    Kp = _round_up(K, 128)
    TT = Kp * max(1, min(tile_t // Kp, _cdiv(Tp, Kp)))
    nt = _cdiv(Tp, TT)
    T_grid = nt * TT + Kp                         # >= T; last halo ends exactly here

    # Single channel concat + pad (one fused XLA copy); no K-shifted duplication.
    xc = jnp.concatenate([x, cx], axis=1).astype(dt)        # (B, C, T)
    if T_grid != T:
        xc = jnp.pad(xc, ((0, 0), (0, 0), (0, T_grid - T)))

    itemsize = np.dtype(dt).itemsize
    cost = pl.CostEstimate(
        flops=int(2 * B * Tp * (2 * C * H + H * Cout)),
        transcendentals=0,
        bytes_accessed=int(B * nt * (TT + Kp) * C * itemsize   # activation reads
                           + B * nt * TT * Cout * itemsize     # output writes
                           + (w1a.size + w1b.size + w2.size) * itemsize
                           + (b1.size + b2.size) * 4))

    halo_blocks = TT // Kp
    kernel = functools.partial(_fftnet_kernel, K, Tp, TT)

    compiler_kwargs = dict(dimension_semantics=("parallel", "parallel"))
    if vmem_limit_bytes is not None:
        compiler_kwargs["vmem_limit_bytes"] = int(vmem_limit_bytes)

    out = pl.pallas_call(
        kernel,
        out_shape=jax.ShapeDtypeStruct((B, Cout, nt * TT), dt),
        grid_spec=pltpu.PrefetchScalarGridSpec(
            num_scalar_prefetch=0,
            grid=(nt, B),            # time axis first: megacore-shardable at B=1
            in_specs=[
                # unshifted window [t*TT, t*TT+TT)
                pl.BlockSpec((None, C, TT), lambda t, b: (b, 0, t)),
                # halo window [(t+1)*TT, (t+1)*TT+Kp)  (same array, second view)
                pl.BlockSpec((None, C, Kp),
                             lambda t, b: (b, 0, (t + 1) * halo_blocks)),
                # weights / biases: constant index -> stay resident in VMEM
                pl.BlockSpec((H, C), lambda t, b: (0, 0)),
                pl.BlockSpec((H, C), lambda t, b: (0, 0)),
                pl.BlockSpec((H, 1), lambda t, b: (0, 0)),
                pl.BlockSpec((Cout, H), lambda t, b: (0, 0)),
                pl.BlockSpec((Cout, 1), lambda t, b: (0, 0)),
            ],
            out_specs=pl.BlockSpec((None, Cout, TT), lambda t, b: (b, 0, t)),
            scratch_shapes=[pltpu.VMEM((C, TT + Kp), dt)],
        ),
        compiler_params=pltpu.CompilerParams(**compiler_kwargs),
        cost_estimate=cost,
    )(xc, xc, w1a, w1b, b1, w2, b2)

    return out[:, :, :Tp] if trim_output else out


def init_params(key, in_channels, out_channels, hid_channels, cond_channels,
                std_f=1.0):
    """Deterministic init mirroring FFTNet.init_weights (weights as (out, in))."""
    std = np.sqrt(std_f / in_channels)
    k = jax.random.split(key, 6)
    w11 = jax.random.normal(k[0], (hid_channels, in_channels), jnp.float32) * std
    w12 = jax.random.normal(k[1], (hid_channels, in_channels), jnp.float32) * std
    wc1 = jax.random.normal(k[2], (hid_channels, cond_channels), jnp.float32) * std
    wc2 = jax.random.normal(k[3], (hid_channels, cond_channels), jnp.float32) * std
    b1 = jnp.zeros((hid_channels,), jnp.float32)      # zeroed by init_weights
    bound = 1.0 / np.sqrt(hid_channels)               # conv2 keeps default init
    w2 = jax.random.uniform(k[4], (out_channels, hid_channels), jnp.float32,
                            minval=-bound, maxval=bound)
    b2 = jax.random.uniform(k[5], (out_channels,), jnp.float32,
                            minval=-bound, maxval=bound)
    return (w11, w12, wc1, wc2, b1, w2, b2)


def fuse_params(params, dtype=jnp.bfloat16):
    """Pre-fuse the four 1x1 convs into two matmul weights and pre-cast ONCE.

    w1a = [w11 | wc1] acts on the unshifted [x; cx] window,
    w1b = [w12 | wc2] acts on the K-shifted window; biases stay f32.
    """
    w11, w12, wc1, wc2, b1, w2, b2 = params
    w1a = jnp.concatenate([w11, wc1], axis=1).astype(dtype)
    w1b = jnp.concatenate([w12, wc2], axis=1).astype(dtype)
    return (w1a, w1b,
            b1.astype(jnp.float32).reshape(-1, 1),
            w2.astype(dtype),
            b2.astype(jnp.float32).reshape(-1, 1))


def fftnet_reference(x, cx, params, layer_id):
    """Pure-JAX reference for verification."""
    K = (2 ** layer_id) // 2
    T = x.shape[2]
    w11, w12, wc1, wc2, b1, w2, b2 = params
    x1, x2 = x[:, :, :T - K], x[:, :, K:]
    cx1, cx2 = cx[:, :, :T - K], cx[:, :, K:]
    conv = lambda a, w: jnp.einsum('oc,bct->bot', w, a)
    z = (conv(x1, w11) + conv(x2, w12) + conv(cx1, wc1) + conv(cx2, wc2)
         + b1[None, :, None])
    h = jnp.maximum(z, 0.0)
    out = jnp.einsum('oh,bht->bot', w2, h) + b2[None, :, None]
    return jnp.maximum(out, 0.0)


if __name__ == "__main__":
    B, Cin, Cout, H, Ccond = 2, 4, 8, 32, 3

    key = jax.random.PRNGKey(0)
    kx, kc, kp = jax.random.split(key, 3)
    params = init_params(kp, Cin, Cout, H, Ccond)
    fused_f32 = fuse_params(params, jnp.float32)
    fused_bf16 = fuse_params(params, jnp.bfloat16)   # production default

    # --- case 1: layer_id=3 (K=4), T=16 : f32 exact check, trimmed + padded ---
    layer_id, T = 3, 16
    Tp = T - (2 ** layer_id) // 2
    x = jax.random.normal(kx, (B, Cin, T), jnp.float32)
    cx = jax.random.normal(kc, (B, Ccond, T), jnp.float32)
    ref = fftnet_reference(x, cx, params, layer_id)

    out = jax.block_until_ready(fftnet_forward(x, cx, fused_f32, layer_id))
    assert out.shape == (B, Cout, Tp)
    np.testing.assert_allclose(np.asarray(out), np.asarray(ref),
                               rtol=1e-5, atol=1e-5)

    # fast path: padded output, tail zeroed in-kernel, no trailing slice pass
    out_pad = jax.block_until_ready(
        fftnet_forward(x, cx, fused_f32, layer_id, trim_output=False))
    assert out_pad.shape[2] % 128 == 0
    np.testing.assert_allclose(np.asarray(out_pad[:, :, :Tp]), np.asarray(ref),
                               rtol=1e-5, atol=1e-5)
    assert float(jnp.max(jnp.abs(out_pad[:, :, Tp:]))) == 0.0

    # --- case 2: layer_id=1 (K=1): smallest unaligned shift ---
    layer_id1 = 1
    ref1 = fftnet_reference(x, cx, params, layer_id1)
    out1 = jax.block_until_ready(fftnet_forward(x, cx, fused_f32, layer_id1))
    np.testing.assert_allclose(np.asarray(out1), np.asarray(ref1),
                               rtol=1e-5, atol=1e-5)

    # --- case 3: multi-tile time grid (nt > 1) with halo across tile edges ---
    T3, layer_id3 = 300, 3
    x3 = jax.random.normal(jax.random.PRNGKey(1), (B, Cin, T3), jnp.float32)
    cx3 = jax.random.normal(jax.random.PRNGKey(2), (B, Ccond, T3), jnp.float32)
    ref3 = fftnet_reference(x3, cx3, params, layer_id3)
    out3 = jax.block_until_ready(
        fftnet_forward(x3, cx3, fused_f32, layer_id3, tile_t=128))
    np.testing.assert_allclose(np.asarray(out3), np.asarray(ref3),
                               rtol=1e-5, atol=1e-5)

    # --- case 4: default bf16 compute/output path (halves HBM traffic) ---
    out_bf16 = jax.block_until_ready(fftnet_forward(x, cx, fused_bf16, layer_id))
    assert out_bf16.dtype == jnp.bfloat16
    np.testing.assert_allclose(np.asarray(out_bf16.astype(jnp.float32)),
                               np.asarray(ref), rtol=5e-2, atol=5e-2)

    print("KERNEL_OK")
</pallas_src>

<mosaic_0001>
module attributes {stable_mosaic.version = 11 : i64} {
  func.func @_fftnet_kernel(%arg0: i32, %arg1: i32, %arg2: memref<1x7x128xf32, #tpu.memory_space<vmem>>, %arg3: memref<1x7x128xf32, #tpu.memory_space<vmem>>, %arg4: memref<32x7xf32, #tpu.memory_space<vmem>>, %arg5: memref<32x7xf32, #tpu.memory_space<vmem>>, %arg6: memref<32x1xf32, #tpu.memory_space<vmem>>, %arg7: memref<8x32xf32, #tpu.memory_space<vmem>>, %arg8: memref<8x1xf32, #tpu.memory_space<vmem>>, %arg9: memref<1x8x128xf32, #tpu.memory_space<vmem>>, %arg10: memref<7x256xf32, #tpu.memory_space<vmem>>) attributes {dimension_semantics = [#tpu.dimension_semantics<parallel>, #tpu.dimension_semantics<parallel>], iteration_bounds = array<i64: 1, 2>, scalar_prefetch = 0 : i64, scratch_operands = 1 : i64, tpu.core_type = #tpu.core_type<tc>, window_params = [{transform_indices = @transform_0, window_bounds = array<i64: 1, 7, 128>}, {transform_indices = @transform_1, window_bounds = array<i64: 1, 7, 128>}, {pipeline_mode = #tpu.pipeline_mode<synchronous>, transform_indices = @transform_2, window_bounds = array<i64: 32, 7>}, {pipeline_mode = #tpu.pipeline_mode<synchronous>, transform_indices = @transform_3, window_bounds = array<i64: 32, 7>}, {pipeline_mode = #tpu.pipeline_mode<synchronous>, transform_indices = @transform_4, window_bounds = array<i64: 32, 1>}, {pipeline_mode = #tpu.pipeline_mode<synchronous>, transform_indices = @transform_5, window_bounds = array<i64: 8, 32>}, {pipeline_mode = #tpu.pipeline_mode<synchronous>, transform_indices = @transform_6, window_bounds = array<i64: 8, 1>}, {transform_indices = @transform_7, window_bounds = array<i64: 1, 8, 128>}]} {
    %c0 = arith.constant 0 : index
    %c0_0 = arith.constant 0 : index
    %c0_1 = arith.constant 0 : index
    %0 = vector.load %arg2[%c0, %c0_0, %c0_1] : memref<1x7x128xf32, #tpu.memory_space<vmem>>, vector<1x7x128xf32>
    %1 = vector.shape_cast %0 : vector<1x7x128xf32> to vector<7x128xf32>
    %c0_2 = arith.constant 0 : index
    %c0_3 = arith.constant 0 : index
    %2 = vector.load %arg10[%c0_2, %c0_3] : memref<7x256xf32, #tpu.memory_space<vmem>>, vector<7x128xf32>
    tpu.vector_store %arg10[%c0_2, %c0_3], %1 {strides = array<i32>} : memref<7x256xf32, #tpu.memory_space<vmem>>, vector<7x128xf32>,
    %c0_4 = arith.constant 0 : index
    %c0_5 = arith.constant 0 : index
    %c0_6 = arith.constant 0 : index
    %3 = vector.load %arg3[%c0_4, %c0_5, %c0_6] : memref<1x7x128xf32, #tpu.memory_space<vmem>>, vector<1x7x128xf32>
    %4 = vector.shape_cast %3 : vector<1x7x128xf32> to vector<7x128xf32>
    %c0_7 = arith.constant 0 : index
    %c128 = arith.constant 128 : index
    %5 = vector.load %arg10[%c0_7, %c128] : memref<7x256xf32, #tpu.memory_space<vmem>>, vector<7x128xf32>
    tpu.vector_store %arg10[%c0_7, %c128], %4 {strides = array<i32>} : memref<7x256xf32, #tpu.memory_space<vmem>>, vector<7x128xf32>,
    %c0_8 = arith.constant 0 : index
    %c4 = arith.constant 4 : index
    %6 = vector.load %arg10[%c0_8, %c4] : memref<7x256xf32, #tpu.memory_space<vmem>>, vector<7x128xf32>
    %c0_9 = arith.constant 0 : index
    %c0_10 = arith.constant 0 : index
    %7 = vector.load %arg4[%c0_9, %c0_10] : memref<32x7xf32, #tpu.memory_space<vmem>>, vector<32x7xf32>
    %cst = arith.constant dense<0.000000e+00> : vector<32x128xf32>
    %8 = tpu.matmul %7, %1, %cst {dimension_numbers = #tpu.dot_dimension_numbers<[1], [0], [0], [1], [0, 0, 1, 1], [], []>} : vector<32x7xf32>, vector<7x128xf32>, vector<32x128xf32> -> vector<32x128xf32>
    %c0_11 = arith.constant 0 : index
    %c0_12 = arith.constant 0 : index
    %9 = vector.load %arg5[%c0_11, %c0_12] : memref<32x7xf32, #tpu.memory_space<vmem>>, vector<32x7xf32>
    %cst_13 = arith.constant dense<0.000000e+00> : vector<32x128xf32>
    %10 = tpu.matmul %9, %6, %cst_13 {dimension_numbers = #tpu.dot_dimension_numbers<[1], [0], [0], [1], [0, 0, 1, 1], [], []>} : vector<32x7xf32>, vector<7x128xf32>, vector<32x128xf32> -> vector<32x128xf32>
    %11 = arith.addf %8, %10 : vector<32x128xf32>
    %c0_14 = arith.constant 0 : index
    %c0_15 = arith.constant 0 : index
    %12 = vector.load %arg6[%c0_14, %c0_15] : memref<32x1xf32, #tpu.memory_space<vmem>>, vector<32x1xf32>
    %13 = vector.broadcast %12 : vector<32x1xf32> to vector<32x128xf32>
    %14 = arith.addf %11, %13 : vector<32x128xf32>
    %cst_16 = arith.constant 0.000000e+00 : f32
    %15 = vector.broadcast %cst_16 : f32 to vector<32x128xf32>
    %16 = arith.maximumf %14, %15 : vector<32x128xf32>
    %c0_17 = arith.constant 0 : index
    %c0_18 = arith.constant 0 : index
    %17 = vector.load %arg7[%c0_17, %c0_18] : memref<8x32xf32, #tpu.memory_space<vmem>>, vector<8x32xf32>
    %cst_19 = arith.constant dense<0.000000e+00> : vector<8x128xf32>
    %18 = tpu.matmul %17, %16, %cst_19 {dimension_numbers = #tpu.dot_dimension_numbers<[1], [0], [0], [1], [0, 0, 1, 1], [], []>} : vector<8x32xf32>, vector<32x128xf32>, vector<8x128xf32> -> vector<8x128xf32>
    %c0_20 = arith.constant 0 : index
    %c0_21 = arith.constant 0 : index
    %19 = vector.load %arg8[%c0_20, %c0_21] : memref<8x1xf32, #tpu.memory_space<vmem>>, vector<8x1xf32>
    %20 = vector.broadcast %19 : vector<8x1xf32> to vector<8x128xf32>
    %21 = arith.addf %18, %20 : vector<8x128xf32>
    %cst_22 = arith.constant 0.000000e+00 : f32
    %22 = vector.broadcast %cst_22 : f32 to vector<8x128xf32>
    %23 = arith.maximumf %21, %22 : vector<8x128xf32>
    %c128_i32 = arith.constant 128 : i32
    %24 = arith.muli %arg0, %c128_i32 : i32
    %25 = tpu.iota {dimensions = array<i32: 1>} : vector<8x128xi32>
    %26 = vector.broadcast %24 : i32 to vector<8x128xi32>
    %27 = arith.addi %26, %25 : vector<8x128xi32>
    %c12_i32 = arith.constant 12 : i32
    %28 = vector.broadcast %c12_i32 : i32 to vector<8x128xi32>
    %29 = arith.cmpi slt, %27, %28 : vector<8x128xi32>
    %cst_23 = arith.constant 0.000000e+00 : f32
    %30 = vector.broadcast %cst_23 : f32 to vector<8x128xf32>
    %31 = arith.select %29, %23, %30 : vector<8x128xi1>, vector<8x128xf32>
    %c0_24 = arith.constant 0 : index
    %c0_25 = arith.constant 0 : index
    %c0_26 = arith.constant 0 : index
    %32 = vector.load %arg9[%c0_24, %c0_25, %c0_26] : memref<1x8x128xf32, #tpu.memory_space<vmem>>, vector<1x8x128xf32>
    %33 = vector.shape_cast %32 : vector<1x8x128xf32> to vector<8x128xf32>
    %34 = vector.shape_cast %31 : vector<8x128xf32> to vector<1x8x128xf32>
    tpu.vector_store %arg9[%c0_24, %c0_25, %c0_26], %34 {strides = array<i32>} : memref<1x8x128xf32, #tpu.memory_space<vmem>>, vector<1x8x128xf32>,
    return
  }
  func.func @transform_0(%arg0: i32, %arg1: i32) -> (i32, i32, i32) {
    %c0_i32 = arith.constant 0 : i32
    %c0_i32_0 = arith.constant 0 : i32
    return %arg1, %c0_i32, %arg0 : i32, i32, i32
  }
  func.func @transform_1(%arg0: i32, %arg1: i32) -> (i32, i32, i32) {
    %c1_i32 = arith.constant 1 : i32
    %0 = arith.addi %arg0, %c1_i32 : i32
    %c1_i32_0 = arith.constant 1 : i32
    %1 = arith.muli %0, %c1_i32_0 : i32
    %c0_i32 = arith.constant 0 : i32
    %c0_i32_1 = arith.constant 0 : i32
    return %arg1, %c0_i32, %1 : i32, i32, i32
  }
  func.func @transform_2(%arg0: i32, %arg1: i32) -> (i32, i32) {
    %c0_i32 = arith.constant 0 : i32
    %c0_i32_0 = arith.constant 0 : i32
    %c0_i32_1 = arith.constant 0 : i32
    return %c0_i32, %c0_i32_0 : i32, i32
  }
  func.func @transform_3(%arg0: i32, %arg1: i32) -> (i32, i32) {
    %c0_i32 = arith.constant 0 : i32
    %c0_i32_0 = arith.constant 0 : i32
    %c0_i32_1 = arith.constant 0 : i32
    return %c0_i32, %c0_i32_0 : i32, i32
  }
  func.func @transform_4(%arg0: i32, %arg1: i32) -> (i32, i32) {
    %c0_i32 = arith.constant 0 : i32
    %c0_i32_0 = arith.constant 0 : i32
    %c0_i32_1 = arith.constant 0 : i32
    return %c0_i32, %c0_i32_0 : i32, i32
  }
  func.func @transform_5(%arg0: i32, %arg1: i32) -> (i32, i32) {
    %c0_i32 = arith.constant 0 : i32
    %c0_i32_0 = arith.constant 0 : i32
    %c0_i32_1 = arith.constant 0 : i32
    return %c0_i32, %c0_i32_0 : i32, i32
  }
  func.func @transform_6(%arg0: i32, %arg1: i32) -> (i32, i32) {
    %c0_i32 = arith.constant 0 : i32
    %c0_i32_0 = arith.constant 0 : i32
    %c0_i32_1 = arith.constant 0 : i32
    return %c0_i32, %c0_i32_0 : i32, i32
  }
  func.func @transform_7(%arg0: i32, %arg1: i32) -> (i32, i32, i32) {
    %c0_i32 = arith.constant 0 : i32
    %c0_i32_0 = arith.constant 0 : i32
    return %arg1, %c0_i32, %arg0 : i32, i32, i32
  }
}

</mosaic_0001>

<llo_original>
// kernel: tpu_custom_call.1
$region0: #{tpu_custom_call.1}
  #allocation0 [shape = 'u32[]', space=smem, size = 0x4, offset = 0x4, fixed_abs, tag = 'smem constant byte address 0x4 - core index']
  #allocation1 [shape = 'u32[72,128]{1,0:T(1,128)}', space=vmem, size = 0x9000, scoped, tag = 'internal scratch']
  #allocation2 [shape = 'f32[7,256]{1,0:T(8,128)}', space=vmem, size = 0x2000, scoped, tag = 'scratch operand']
  %s0 = inlined_call_operand.vmem [shape: f32[2,7,256], index: 0, kind: input, shape index: {}]
  %s1 = inlined_call_operand.vmem [shape: f32[2,7,256], index: 1, kind: input, shape index: {}]
  %s2 = inlined_call_operand.vmem [shape: f32[32,7], index: 2, kind: input, shape index: {}]
  %s3 = inlined_call_operand.vmem [shape: f32[32,7], index: 3, kind: input, shape index: {}]
  %s4 = inlined_call_operand.vmem [shape: f32[32,1], index: 4, kind: input, shape index: {}]
  %s5 = inlined_call_operand.vmem [shape: f32[8,32], index: 5, kind: input, shape index: {}]
  %s6 = inlined_call_operand.vmem [shape: f32[8,1], index: 6, kind: input, shape index: {}]
  %s7 = inlined_call_operand.hbm [shape: f32[2,8,128], index: 7, kind: output, shape index: {}]
  %s8 = sld [smem:[#allocation0]]
  $region61: #{tpu_custom_call.1} parent=0
    _
  %s10 = ssub.s32 1, %s8
  %s11 = scalar_select 0, %s10, %s8
  $region1: #{tpu_custom_call.1} parent=0
    #allocation3 [shape = 'u8[8192]{0}', space=vmem, size = 0x2000, scoped, tag = 'output window, operand 0']
    #allocation4 [shape = 's32[2]{0}', space=sflag, size = 0x8, scoped, tag = 'scoped memory for tpu_custom_call.1']
    %12 = vsyncpa [#allocation4], 0
    %s13 = scalar_lea.sflag [#allocation4], 1
    %14 = vsyncpa %s13, 0
    loop: start=0, step=1, limit=4
    $region2: #{tpu_custom_call.1} parent=1 // loop_pre_header
      _
    $region3: #{tpu_custom_call.1} parent=1 // loop_header
      %s16 = sphi 0, %s20
      %p17 = scmp.ge.s32.totalorder %s16, 4
      %s23 = sphi 0, %s35
      %s24 = sphi 0, %s31
      %s25 = sphi 0, %s23
      %s26 = sphi 0, %s24
      %s27 = sphi 0, %s25
      %s28 = sphi 0, %s26
      %s40 = sphi 0, %s42
      %s43 = sphi 0, %s40
      %s44 = sphi 0, %s43
      %s60 = sphi 0, %s44
      %s70 = sphi 0, %s72
      %s73 = sphi 0, %s70
      %s74 = sphi 0, %s73
      %s90 = sphi 0, %s74
      %s94 = sphi 0, %s94
      %s96 = sphi 0, %s94
      %s97 = sphi 0, %s96
      %s111 = sphi 0, %s97
      %s115 = sphi 0, %s115
      %s117 = sphi 0, %s115
      %s118 = sphi 0, %s117
      %s132 = sphi 0, %s118
      %s136 = sphi 0, %s136
      %s138 = sphi 0, %s136
      %s139 = sphi 0, %s138
      %s153 = sphi 0, %s139
      %s157 = sphi 0, %s157
      %s159 = sphi 0, %s157
      %s160 = sphi 0, %s159
      %s174 = sphi 0, %s160
      %s178 = sphi 0, %s178
      %s180 = sphi 0, %s178
      %s181 = sphi 0, %s180
      %s195 = sphi 0, %s181
      %s203 = sphi 0, %s205
      %s206 = sphi 0, %s203
      %s207 = sphi 0, %s206
      %s223 = sphi 0, %s207
    $region4: #{tpu_custom_call.1} parent=1 // loop_header_branch
      %19 = sbr.rel (%p17) target = $region8
    $region5: #{tpu_custom_call.1} parent=1 // loop_body
      %s21 = ssub.s32 %s16, 1
      %s22 = ssub.s32 %s16, 2
      %s29 = sadd.s32 1, %s24
      %p30 = scmp.ge.s32.totalorder %s29, 2
      %s31 = scalar_select %p30, 0, %s29
      %s32 = sadd.s32 1, %s23
      %s33 = scalar_select %p30, %s32, %s23
      %p34 = scmp.ge.s32.totalorder %s33, 1
      %s35 = scalar_select %p34, 0, %s33
      %s36 = ssub.s32 %s24, %s31
      %s37 = ssub.s32 %s23, %s35
      %s38 = sor.u32 %s36, %s37
      %p39 = scmp.eq.s32.totalorder %s38, 0
      %s41 = sadd.s32 %s40, 1
      %s42 = scalar_select %p39, %s40, %s41
      %p45 = pneg %p39
      %p46 = scmp.eq.s32.totalorder %s16, 1
      %p47 = por %p45, %p46
      %p48 = scmp.ne.s32.totalorder %s40, %s43
      %p49 = scmp.eq.s32.totalorder %s16, 0
      %p50 = por %p48, %p49
      %p51 = scmp.ne.s32.totalorder %s40, %s43
      %p52 = scmp.eq.s32.totalorder %s21, 1
      %p53 = por %p51, %p52
      %p54 = scmp.ne.s32.totalorder %s43, %s44
      %p55 = scmp.eq.s32.totalorder %s21, 0
      %p56 = por %p54, %p55
      %p57 = scmp.ne.s32.totalorder %s43, %s44
      %p58 = scmp.eq.s32.totalorder %s22, 1
      %p59 = por %p57, %p58
      %p61 = scmp.ne.s32.totalorder %s44, %s60
      %p62 = scmp.eq.s32.totalorder %s22, 0
      %p63 = por %p61, %p62
      %s64 = sadd.s32 %s23, 1
      %s65 = sadd.s32 %s35, 1
      %s66 = ssub.s32 %s24, %s31
      %s67 = ssub.s32 %s64, %s65
      %s68 = sor.u32 %s66, %s67
      %p69 = scmp.eq.s32.totalorder %s68, 0
      %s71 = sadd.s32 %s70, 1
      %s72 = scalar_select %p69, %s70, %s71
      %p75 = pneg %p69
      %p76 = scmp.eq.s32.totalorder %s16, 1
      %p77 = por %p75, %p76
      %p78 = scmp.ne.s32.totalorder %s70, %s73
      %p79 = scmp.eq.s32.totalorder %s16, 0
      %p80 = por %p78, %p79
      %p81 = scmp.ne.s32.totalorder %s70, %s73
      %p82 = scmp.eq.s32.totalorder %s21, 1
      %p83 = por %p81, %p82
      %p84 = scmp.ne.s32.totalorder %s73, %s74
      %p85 = scmp.eq.s32.totalorder %s21, 0
      %p86 = por %p84, %p85
      %p87 = scmp.ne.s32.totalorder %s73, %s74
      %p88 = scmp.eq.s32.totalorder %s22, 1
      %p89 = por %p87, %p88
      %p91 = scmp.ne.s32.totalorder %s74, %s90
      %p92 = scmp.eq.s32.totalorder %s22, 0
      %p93 = por %p91, %p92
      %s95 = sadd.s32 %s94, 1
      %p98 = scmp.eq.s32.totalorder %s16, 1
      %p99 = scmp.ne.s32.totalorder %s94, %s96
      %p100 = scmp.eq.s32.totalorder %s16, 0
      %p101 = por %p99, %p100
      %p102 = scmp.ne.s32.totalorder %s94, %s96
      %p103 = scmp.eq.s32.totalorder %s21, 1
      %p104 = por %p102, %p103
      %p105 = scmp.ne.s32.totalorder %s96, %s97
      %p106 = scmp.eq.s32.totalorder %s21, 0
      %p107 = por %p105, %p106
      %p108 = scmp.ne.s32.totalorder %s96, %s97
      %p109 = scmp.eq.s32.totalorder %s22, 1
      %p110 = por %p108, %p109
      %p112 = scmp.ne.s32.totalorder %s97, %s111
      %p113 = scmp.eq.s32.totalorder %s22, 0
      %p114 = por %p112, %p113
      %s116 = sadd.s32 %s115, 1
      %p119 = scmp.eq.s32.totalorder %s16, 1
      %p120 = scmp.ne.s32.totalorder %s115, %s117
      %p121 = scmp.eq.s32.totalorder %s16, 0
      %p122 = por %p120, %p121
      %p123 = scmp.ne.s32.totalorder %s115, %s117
      %p124 = scmp.eq.s32.totalorder %s21, 1
      %p125 = por %p123, %p124
      %p126 = scmp.ne.s32.totalorder %s117, %s118
      %p127 = scmp.eq.s32.totalorder %s21, 0
      %p128 = por %p126, %p127
      %p129 = scmp.ne.s32.totalorder %s117, %s118
      %p130 = scmp.eq.s32.totalorder %s22, 1
      %p131 = por %p129, %p130
      %p133 = scmp.ne.s32.totalorder %s118, %s132
      %p134 = scmp.eq.s32.totalorder %s22, 0
      %p135 = por %p133, %p134
      %s137 = sadd.s32 %s136, 1
      %p140 = scmp.eq.s32.totalorder %s16, 1
      %p141 = scmp.ne.s32.totalorder %s136, %s138
      %p142 = scmp.eq.s32.totalorder %s16, 0
      %p143 = por %p141, %p142
      %p144 = scmp.ne.s32.totalorder %s136, %s138
      %p145 = scmp.eq.s32.totalorder %s21, 1
      %p146 = por %p144, %p145
      %p147 = scmp.ne.s32.totalorder %s138, %s139
      %p148 = scmp.eq.s32.totalorder %s21, 0
      %p149 = por %p147, %p148
      %p150 = scmp.ne.s32.totalorder %s138, %s139
      %p151 = scmp.eq.s32.totalorder %s22, 1
      %p152 = por %p150, %p151
      %p154 = scmp.ne.s32.totalorder %s139, %s153
      %p155 = scmp.eq.s32.totalorder %s22, 0
      %p156 = por %p154, %p155
      %s158 = sadd.s32 %s157, 1
      %p161 = scmp.eq.s32.totalorder %s16, 1
      %p162 = scmp.ne.s32.totalorder %s157, %s159
      %p163 = scmp.eq.s32.totalorder %s16, 0
      %p164 = por %p162, %p163
      %p165 = scmp.ne.s32.totalorder %s157, %s159
      %p166 = scmp.eq.s32.totalorder %s21, 1
      %p167 = por %p165, %p166
      %p168 = scmp.ne.s32.totalorder %s159, %s160
      %p169 = scmp.eq.s32.totalorder %s21, 0
      %p170 = por %p168, %p169
      %p171 = scmp.ne.s32.totalorder %s159, %s160
      %p172 = scmp.eq.s32.totalorder %s22, 1
      %p173 = por %p171, %p172
      %p175 = scmp.ne.s32.totalorder %s160, %s174
      %p176 = scmp.eq.s32.totalorder %s22, 0
      %p177 = por %p175, %p176
      %s179 = sadd.s32 %s178, 1
      %p182 = scmp.eq.s32.totalorder %s16, 1
      %p183 = scmp.ne.s32.totalorder %s178, %s180
      %p184 = scmp.eq.s32.totalorder %s16, 0
      %p185 = por %p183, %p184
      %p186 = scmp.ne.s32.totalorder %s178, %s180
      %p187 = scmp.eq.s32.totalorder %s21, 1
      %p188 = por %p186, %p187
      %p189 = scmp.ne.s32.totalorder %s180, %s181
      %p190 = scmp.eq.s32.totalorder %s21, 0
      %p191 = por %p189, %p190
      %p192 = scmp.ne.s32.totalorder %s180, %s181
      %p193 = scmp.eq.s32.totalorder %s22, 1
      %p194 = por %p192, %p193
      %p196 = scmp.ne.s32.totalorder %s181, %s195
      %p197 = scmp.eq.s32.totalorder %s22, 0
      %p198 = por %p196, %p197
      %s199 = ssub.s32 %s24, %s31
      %s200 = ssub.s32 %s23, %s35
      %s201 = sor.u32 %s199, %s200
      %p202 = scmp.eq.s32.totalorder %s201, 0
      %s204 = sadd.s32 %s203, 1
      %s205 = scalar_select %p202, %s203, %s204
      %p208 = pneg %p202
      %p209 = scmp.eq.s32.totalorder %s16, 1
      %p210 = por %p208, %p209
      %p211 = scmp.ne.s32.totalorder %s203, %s206
      %p212 = scmp.eq.s32.totalorder %s16, 0
      %p213 = por %p211, %p212
      %p214 = scmp.ne.s32.totalorder %s203, %s206
      %p215 = scmp.eq.s32.totalorder %s21, 1
      %p216 = por %p214, %p215
      %p217 = scmp.ne.s32.totalorder %s206, %s207
      %p218 = scmp.eq.s32.totalorder %s21, 0
      %p219 = por %p217, %p218
      %p220 = scmp.ne.s32.totalorder %s206, %s207
      %p221 = scmp.eq.s32.totalorder %s22, 1
      %p222 = por %p220, %p221
      %p224 = scmp.ne.s32.totalorder %s207, %s223
      %p225 = scmp.eq.s32.totalorder %s22, 0
      %p226 = por %p224, %p225
      %p227 = scmp.le.s32.totalorder 1, %s16
      %p228 = scmp.lt.s32.totalorder %s16, 3
      %p229 = pnand %p227, %p228
      %p230 = pneg %p229
      // Predicated region
      $region9: #{tpu_custom_call.1} parent=5 // pred_check
        _
      $region10: #{tpu_custom_call.1} parent=5 // pred_check_branch
        %232 = sbr.rel (%p229) target = $region12
      $region11: #{tpu_custom_call.1} parent=5 // pred_region
        %s233 = ssub.s32 %s16, 1
        // Predicated region
        $region13: #{tpu_custom_call.1} parent=11 // pred_check
          %p234 = pneg %p107
        $region14: #{tpu_custom_call.1} parent=11 // pred_check_branch
          %236 = sbr.rel (%p234) target = $region16
        $region15: #{tpu_custom_call.1} parent=11 // pred_region
          _
        $region16: #{tpu_custom_call.1} parent=11 // pred_fallthru
          _
        // Predicated region
        $region17: #{tpu_custom_call.1} parent=11 // pred_check
          %p237 = pneg %p128
        $region18: #{tpu_custom_call.1} parent=11 // pred_check_branch
          %239 = sbr.rel (%p237) target = $region20
        $region19: #{tpu_custom_call.1} parent=11 // pred_region
          _
        $region20: #{tpu_custom_call.1} parent=11 // pred_fallthru
          _
        // Predicated region
        $region21: #{tpu_custom_call.1} parent=11 // pred_check
          %p240 = pneg %p149
        $region22: #{tpu_custom_call.1} parent=11 // pred_check_branch
          %242 = sbr.rel (%p240) target = $region24
        $region23: #{tpu_custom_call.1} parent=11 // pred_region
          _
        $region24: #{tpu_custom_call.1} parent=11 // pred_fallthru
          _
        // Predicated region
        $region25: #{tpu_custom_call.1} parent=11 // pred_check
          %p243 = pneg %p170
        $region26: #{tpu_custom_call.1} parent=11 // pred_check_branch
          %245 = sbr.rel (%p243) target = $region28
        $region27: #{tpu_custom_call.1} parent=11 // pred_region
          _
        $region28: #{tpu_custom_call.1} parent=11 // pred_fallthru
          _
        // Predicated region
        $region29: #{tpu_custom_call.1} parent=11 // pred_check
          %p246 = pneg %p191
        $region30: #{tpu_custom_call.1} parent=11 // pred_check_branch
          %248 = sbr.rel (%p246) target = $region32
        $region31: #{tpu_custom_call.1} parent=11 // pred_region
          _
        $region32: #{tpu_custom_call.1} parent=11 // pred_fallthru
          _
      $region12: #{tpu_custom_call.1} parent=5 // pred_fallthru
        _
      %p249 = scmp.lt.s32.totalorder %s16, 2
      // Predicated region
      $region33: #{tpu_custom_call.1} parent=5 // pred_check
        %p250 = pneg %p249
      $region34: #{tpu_custom_call.1} parent=5 // pred_check_branch
        %252 = sbr.rel (%p250) target = $region36
      $region35: #{tpu_custom_call.1} parent=5 // pred_region
        // Predicated region
        $region37: #{tpu_custom_call.1} parent=35 // pred_check
          %p253 = pneg %p50
        $region38: #{tpu_custom_call.1} parent=35 // pred_check_branch
          %255 = sbr.rel (%p253) target = $region40
        $region39: #{tpu_custom_call.1} parent=35 // pred_region
          %p256 = scmp.lt.s32.totalorder %s24, 1
          %s257 = scalar_select %p256, %s24, 1
          %p258 = scmp.lt.s32.totalorder %s23, 1
          %s259 = scalar_select %p258, %s23, 1
          %s260 = smul.addr %s257, 2
          %s261 = sadd.s32 %s259, %s260
          %s262 = smul.addr %s261, 8
          %s263 = scalar_lea.vmem %s0, %s262
        $region40: #{tpu_custom_call.1} parent=35 // pred_fallthru
          _
        // Predicated region
        $region41: #{tpu_custom_call.1} parent=35 // pred_check
          %p264 = pneg %p80
        $region42: #{tpu_custom_call.1} parent=35 // pred_check_branch
          %266 = sbr.rel (%p264) target = $region44
        $region43: #{tpu_custom_call.1} parent=35 // pred_region
          %s267 = sadd.s32 %s23, 1
          %p268 = scmp.lt.s32.totalorder %s24, 1
          %s269 = scalar_select %p268, %s24, 1
          %p270 = scmp.lt.s32.totalorder %s267, 1
          %s271 = scalar_select %p270, %s267, 1
          %s272 = smul.addr %s269, 2
          %s273 = sadd.s32 %s271, %s272
          %s274 = smul.addr %s273, 8
          %s275 = scalar_lea.vmem %s1, %s274
          %s276 = sadd.s32 %s23, 1
        $region44: #{tpu_custom_call.1} parent=35 // pred_fallthru
          _
      $region36: #{tpu_custom_call.1} parent=5 // pred_fallthru
        _
      %p277 = scmp.le.s32.totalorder 1, %s16
      %p278 = scmp.lt.s32.totalorder %s16, 3
      %p279 = pnand %p277, %p278
      %p280 = pneg %p279
      // Predicated region
      $region45: #{tpu_custom_call.1} parent=5 // pred_check
        _
      $region46: #{tpu_custom_call.1} parent=5 // pred_check_branch
        %282 = sbr.rel (%p279) target = $region48
      $region47: #{tpu_custom_call.1} parent=5 // pred_region
        %s283 = ssub.s32 %s16, 1
        %p284 = scmp.lt.s32.totalorder %s26, 1
        %s285 = scalar_select %p284, %s26, 1
        %p286 = scmp.lt.s32.totalorder %s25, 1
        %s287 = scalar_select %p286, %s25, 1
        %s288 = smul.addr %s285, 2
        %s289 = sadd.s32 %s287, %s288
        %s290 = smul.addr %s289, 8
        %s291 = scalar_lea.vmem %s0, %s290
        %p292 = pneg %p56
        %p293 = pneg %p53
        %s294 = sadd.s32 %s25, 1
        %p295 = scmp.lt.s32.totalorder %s26, 1
        %s296 = scalar_select %p295, %s26, 1
        %p297 = scmp.lt.s32.totalorder %s294, 1
        %s298 = scalar_select %p297, %s294, 1
        %s299 = smul.addr %s296, 2
        %s300 = sadd.s32 %s298, %s299
        %s301 = smul.addr %s300, 8
        %s302 = scalar_lea.vmem %s1, %s301
        %p303 = pneg %p86
        %p304 = pneg %p83
        %p305 = pneg %p107
        %p306 = pneg %p104
        %p307 = pneg %p128
        %p308 = pneg %p125
        %p309 = pneg %p149
        %p310 = pneg %p146
        %p311 = pneg %p170
        %p312 = pneg %p167
        %p313 = pneg %p191
        %p314 = pneg %p188
        %p315 = pneg %p219
        %p316 = pneg %p216
        %s317 = sand.u32 %s206, 1
        %s318 = scalar_lea.sflag [#allocation4], %s317
        %s319 = sand.u32 %s206, 1
        %s320 = smul.addr %s319, 8
        %s321 = scalar_lea.vmem [#allocation3], %s320
        %p322 = scmp.lt.s32.totalorder %s26, 1
        %s323 = scalar_select %p322, %s26, 1
        %p324 = scmp.lt.s32.totalorder %s25, 1
        %s325 = scalar_select %p324, %s25, 1
        %s326 = smul.addr %s323, 2
        %s327 = sadd.s32 %s325, %s326
        %s328 = smul.addr %s327, 8
        %s329 = scalar_lea.vmem %s0, %s328
        %s330 = sadd.s32 %s25, 1
        %p331 = scmp.lt.s32.totalorder %s26, 1
        %s332 = scalar_select %p331, %s26, 1
        %p333 = scmp.lt.s32.totalorder %s330, 1
        %s334 = scalar_select %p333, %s330, 1
        %s335 = smul.addr %s332, 2
        %s336 = sadd.s32 %s334, %s335
        %s337 = smul.addr %s336, 8
        %s338 = scalar_lea.vmem %s1, %s337
        %s339 = sadd.s32 %s25, 1
        %v340 = vld [vmem:[%s329] sm:$0x7f]
        %341 = vst [vmem:[#allocation2] sm:$0x7f] %v340
        %v342 = vld [vmem:[%s338] sm:$0x7f]
        %343 = vst [vmem:[#allocation2 + $0x8] sm:$0x7f] %v342
        %v344 = vld [vmem:[#allocation2] sm:$0x7f]
        %v345 = vld [vmem:[#allocation2 + $0x8] sm:$0x7f]
        %v346 = vld [vmem:[%s2] sm:$0xff]
        %v347 = vld [vmem:[%s2 + $0x8] sm:$0xff]
        %v348 = vld [vmem:[%s2 + $0x10] sm:$0xff]
        %v349 = vld [vmem:[%s2 + $0x18] sm:$0xff]
        %v350 = vld [vmem:[%s3] sm:$0xff]
        %v351 = vld [vmem:[%s3 + $0x8] sm:$0xff]
        %v352 = vld [vmem:[%s3 + $0x10] sm:$0xff]
        %v353 = vld [vmem:[%s3 + $0x18] sm:$0xff]
        %356 = vrot.lane.b32.xlu0 %v344, 124
        %v357 = vpop.permute.xlu0 %356
        %358 = vrot.lane.b32.xlu0 %v345, 124
        %v359 = vpop.permute.xlu0 %358
        %vm360 = vcmask 1014784
        %v361 = vsel %vm360, %v357, %v359
        %vm362 = vcmask 56320
        %v364 = vsel %vm362, %v350, 0
        %v367 = vsel %vm362, %v351, 0
        %v370 = vsel %vm362, %v352, 0
        %v373 = vsel %vm362, %v353, 0
        %vm375 = vcmask 1046528
        %v376 = vsel %vm375, %v361, 0
        %378 = vmatpush.msra.mxu0 0.0
        %379 = vmatpush.msra.mxu0 0.0
        %380 = vmatpush.msra.mxu0 0.0
        %381 = vmatpush.msra.mxu0 0.0
        %382 = vmatpush.msra.mxu0 0.0
        %383 = vmatpush.msra.mxu0 0.0
        %384 = vmatpush.msra.mxu0 0.0
        %385 = vmatpush.msra.mxu0 0.0
        %386 = vmatpush.msra.mxu0 0.0
        %387 = vmatpush.msra.mxu0 0.0
        %388 = vmatpush.msra.mxu0 0.0
        %389 = vmatpush.msra.mxu0 0.0
        %390 = vmatpush.msra.mxu0 0.0
        %391 = vmatpush.msra.mxu0 0.0
        %392 = vmatpush.msra.mxu0 0.0
        %393 = vmatpush.msra.mxu0 %v376
        %394 = vmatmul.f32.gmra.mxu0 %v364
        %v395 = vpop.f32.mrf.mxu0
        %v396 = vadd.f32 0.0, %v395
        %397 = vmatmul.f32.gmra.mxu0 %v367
        %v398 = vpop.f32.mrf.mxu0
        %v399 = vadd.f32 0.0, %v398
        %400 = vmatmul.f32.gmra.mxu0 %v370
        %v401 = vpop.f32.mrf.mxu0
        %v402 = vadd.f32 0.0, %v401
        %403 = vmatmul.f32.gmra.mxu0 %v373
        %v404 = vpop.f32.mrf.mxu0
        %v405 = vadd.f32 0.0, %v404
        %406 = vdwg.mxu0
        %v408 = vsel %vm362, %v346, 0
        %v411 = vsel %vm362, %v347, 0
        %v414 = vsel %vm362, %v348, 0
        %v417 = vsel %vm362, %v349, 0
        %v420 = vsel %vm375, %v340, 0
        %422 = vmatpush.msra.mxu0 0.0
        %423 = vmatpush.msra.mxu0 0.0
        %424 = vmatpush.msra.mxu0 0.0
        %425 = vmatpush.msra.mxu0 0.0
        %426 = vmatpush.msra.mxu0 0.0
        %427 = vmatpush.msra.mxu0 0.0
        %428 = vmatpush.msra.mxu0 0.0
        %429 = vmatpush.msra.mxu0 0.0
        %430 = vmatpush.msra.mxu0 0.0
        %431 = vmatpush.msra.mxu0 0.0
        %432 = vmatpush.msra.mxu0 0.0
        %433 = vmatpush.msra.mxu0 0.0
        %434 = vmatpush.msra.mxu0 0.0
        %435 = vmatpush.msra.mxu0 0.0
        %436 = vmatpush.msra.mxu0 0.0
        %437 = vmatpush.msra.mxu0 %v420
        %438 = vmatmul.f32.gmra.mxu0 %v408
        %v439 = vpop.f32.mrf.mxu0
        %v440 = vadd.f32 %v396, %v439
        %441 = vmatmul.f32.gmra.mxu0 %v411
        %v442 = vpop.f32.mrf.mxu0
        %v443 = vadd.f32 %v399, %v442
        %444 = vmatmul.f32.gmra.mxu0 %v414
        %v445 = vpop.f32.mrf.mxu0
        %v446 = vadd.f32 %v402, %v445
        %447 = vmatmul.f32.gmra.mxu0 %v417
        %v448 = vpop.f32.mrf.mxu0
        %v449 = vadd.f32 %v405, %v448
        %450 = vdwg.mxu0
        %v451 = vld [vmem:[%s4] sm:$0xff]
        %v452 = vld [vmem:[%s4 + $0x8] sm:$0xff]
        %v453 = vld [vmem:[%s4 + $0x10] sm:$0xff]
        %v454 = vld [vmem:[%s4 + $0x18] sm:$0xff]
        %456 = vset.pattern.permute.xlu0 0
        %457 = vperm.xlu0 %456, %v451
        %v458 = vpop.permute.xlu0 %457
        %461 = vset.pattern.permute.xlu0 0
        %462 = vperm.xlu0 %461, %v452
        %v463 = vpop.permute.xlu0 %462
        %466 = vset.pattern.permute.xlu0 0
        %467 = vperm.xlu0 %466, %v453
        %v468 = vpop.permute.xlu0 %467
        %471 = vset.pattern.permute.xlu0 0
        %472 = vperm.xlu0 %471, %v454
        %v473 = vpop.permute.xlu0 %472
        %v475 = vadd.f32 %v440, %v458
        %v476 = vadd.f32 %v443, %v463
        %v477 = vadd.f32 %v446, %v468
        %v478 = vadd.f32 %v449, %v473
        %v479 = vmax.f32 %v475, 0.0
        %v480 = vmax.f32 %v476, 0.0
        %v481 = vmax.f32 %v477, 0.0
        %v482 = vmax.f32 %v478, 0.0
        %v483 = vld [vmem:[%s5] sm:$0xff]
        %v484 = vld [vmem:[%s6] sm:$0xff]
        %486 = vset.pattern.permute.xlu0 0
        %487 = vperm.xlu0 %486, %v484
        %v488 = vpop.permute.xlu0 %487
        %vm490 = vcmask 261120
        %v492 = vsel %vm490, %v483, 0
        %494 = vmatpush.msra.mxu0 0.0
        %495 = vmatpush.msra.mxu0 0.0
        %496 = vmatpush.msra.mxu0 0.0
        %497 = vmatpush.msra.mxu0 0.0
        %498 = vmatpush.msra.mxu0 0.0
        %499 = vmatpush.msra.mxu0 0.0
        %500 = vmatpush.msra.mxu0 0.0
        %501 = vmatpush.msra.mxu0 0.0
        %502 = vmatpush.msra.mxu0 0.0
        %503 = vmatpush.msra.mxu0 0.0
        %504 = vmatpush.msra.mxu0 0.0
        %505 = vmatpush.msra.mxu0 0.0
        %506 = vmatpush.msra.mxu0 %v482
        %507 = vmatpush.msra.mxu0 %v481
        %508 = vmatpush.msra.mxu0 %v480
        %509 = vmatpush.msra.mxu0 %v479
        %510 = vmatmul.f32.gmra.mxu0 %v492
        %v511 = vpop.f32.mrf.mxu0
        %v512 = vadd.f32 %v488, %v511
        %513 = vdwg.mxu0
        %v514 = vmax.f32 %v512, 0.0
        %s515 = smul.u32 %s25, 128
        %v516 = vlaneseq
        %v517 = vand.u32 %v516, 127
        %v518 = vstv %s515
        %v519 = vadd.s32 %v518, %v517
        %vm520 = vcmp.lt.s32.totalorder %v519, 12
        %v521 = vsel %vm520, %v514, 0.0
        %522 = vst [vmem:[%s321] sm:$0xff] %v521
        %s523 = sand.u32 %s206, 1
        %s524 = scalar_lea.sflag [#allocation4], %s523
        %s525 = sand.u32 %s206, 1
        %s526 = smul.addr %s525, 8
        %s527 = scalar_lea.vmem [#allocation3], %s526
        // Predicated region
        $region49: #{tpu_custom_call.1} parent=47 // pred_check
          %p528 = pneg %p216
        $region50: #{tpu_custom_call.1} parent=47 // pred_check_branch
          %530 = sbr.rel (%p528) target = $region52
        $region51: #{tpu_custom_call.1} parent=47 // pred_region
          %532 = vsyncadd %s524, 0
          %s533 = sadd.s32 %s25, %s26
          %s534 = smul.addr %s533, 8
          %s535 = scalar_lea.hbm %s7, %s534
          %s537 = sshll.u32 %s527, 4
          %s538 = int_to_ptr.vmem [resolvable:$true] %s537
          %s539 = sshll.u32 %s535, 4
          %s540 = int_to_ptr.hbm [resolvable:$true] %s539
          %542 = dma.vmem_to_hbm [thread:$0]  %s538, 128, %s540, %s524
        $region52: #{tpu_custom_call.1} parent=47 // pred_fallthru
          _
      $region48: #{tpu_custom_call.1} parent=5 // pred_fallthru
        _
      %p543 = scmp.le.s32.totalorder 2, %s16
      // Predicated region
      $region53: #{tpu_custom_call.1} parent=5 // pred_check
        %p544 = pneg %p543
      $region54: #{tpu_custom_call.1} parent=5 // pred_check_branch
        %546 = sbr.rel (%p544) target = $region56
      $region55: #{tpu_custom_call.1} parent=5 // pred_region
        %s547 = ssub.s32 %s16, 2
        // Predicated region
        $region57: #{tpu_custom_call.1} parent=55 // pred_check
          %p548 = pneg %p222
        $region58: #{tpu_custom_call.1} parent=55 // pred_check_branch
          %550 = sbr.rel (%p548) target = $region60
        $region59: #{tpu_custom_call.1} parent=55 // pred_region
          %s551 = sand.u32 %s207, 1
          %s552 = scalar_lea.sflag [#allocation4], %s551
          %s553 = sand.u32 %s207, 1
          %s554 = smul.addr %s553, 8
          %s555 = scalar_lea.vmem [#allocation3], %s554
          %557 = dma.done %s552, 128
        $region60: #{tpu_custom_call.1} parent=55 // pred_fallthru
          _
      $region56: #{tpu_custom_call.1} parent=5 // pred_fallthru
        _
    $region6: #{tpu_custom_call.1} parent=1 // loop_footer
      %s20 = sadd.s32 1, %s16
    $region7: #{tpu_custom_call.1} parent=1 // loop_footer_branch
      %15 = sbr.rel target = $region3
    $region8: #{tpu_custom_call.1} parent=1 // loop_exit
      _
    %558 = vsyncpa [#allocation4], 1
    %s559 = scalar_lea.sflag [#allocation4], 1
    %560 = vsyncpa %s559, 1

</llo_original>
